<compile_context>
chip_gen: v7x
topology: tpu7x:2x2x1
jax: 0.10.0
libtpu: 0.0.40
codegen_flags: <defaults>
</compile_context>

<pallas_src>
import functools

import jax
import jax.numpy as jnp
from jax.experimental import pallas as pl
from jax.experimental.pallas import tpu as pltpu


def _vmem_capacity_bytes() -> int:
    """Physical VMEM per TensorCore (128 MiB v5e/v6e, 64 MiB v7x)."""
    try:
        return int(pltpu.get_tpu_info().vmem_capacity_bytes)
    except Exception:
        return 128 << 20


def _rmsnorm_kernel(x_ref, g_ref, o_ref, *, eps, inv_d):
    # x_ref: (block_rows, d_model); g_ref: (1, d_model) f32, VMEM-resident
    # across grid steps (constant index map); o_ref: (block_rows, d_model).
    # Single load reused for both the reduction and the scaled output; Mosaic
    # streams the upcast per-vreg (budget below still reserves one f32 row).
    x = x_ref[...].astype(jnp.float32)
    ms = jnp.sum(x * x, axis=-1, keepdims=True) * inv_d
    inv_rms = jax.lax.rsqrt(ms + eps)  # EUP slot; VPU stays free
    o_ref[...] = (x * inv_rms * g_ref[...]).astype(o_ref.dtype)


def _rmsnorm_folded_kernel(x_ref, g_ref, p_ref, o_ref, *, eps, inv_d):
    # Lane-dense path for small d_model: each physical row holds `fold`
    # logical rows side by side so the last dim is 128 and stores are
    # unmasked.  p_ref is a (w, w) block-diagonal all-ones matrix (constant
    # index map, VMEM-resident) that performs the segmented sum(x^2) and the
    # broadcast back over each d_model-wide segment on the MXU.
    x = x_ref[...].astype(jnp.float32)
    ms = jnp.dot(x * x, p_ref[...], preferred_element_type=jnp.float32) * inv_d
    inv_rms = jax.lax.rsqrt(ms + eps)
    o_ref[...] = (x * inv_rms * g_ref[...]).astype(o_ref.dtype)


def _choose_block_rows(rows: int, lane_width: int, in_bytes: int,
                       vmem_capacity: int) -> int:
    """Largest row block that fits a generation-aware VMEM budget."""
    # Sublane packing granularity: f32 packs 8 rows/vreg, bf16 16, 8-bit 32.
    if in_bytes >= 4:
        pack = 8
    elif in_bytes == 2:
        pack = 16
    else:
        pack = 32

    # ~40% of physical VMEM (v5e/v6e ~50 MiB, v7x ~26 MiB), capped at 50 MiB.
    budget = min(int(0.4 * vmem_capacity), 50 << 20)
    budget = max(budget, 4 << 20)

    # Working set per grid step: double-buffered input + double-buffered
    # output (I/O dtype) plus one f32 copy of the tile for the upcast math.
    per_row = lane_width * (4 * in_bytes + 4)
    block_rows = max(pack, (budget // per_row) // pack * pack)
    # Measured mem-bound tiling saturates around 512-1024 rows; cap there.
    block_rows = min(block_rows, 1024)

    # Guarantee multiple grid steps so dimension_semantics=("parallel",) can
    # shard rows across v7x's 2 TensorCores (>= 4 blocks there); splitting
    # into 2 blocks on single-TC v5e/v6e costs only ~0.35 us of step overhead.
    min_blocks = 4 if vmem_capacity <= (64 << 20) else 2
    per_block = -(-rows // min_blocks)          # cdiv
    per_block = -(-per_block // pack) * pack    # round up to pack
    block_rows = min(block_rows, max(per_block, pack))

    # If the block covers all rows anyway, use the exact row count (a block
    # equal to the full array dim is always layout-legal).
    if block_rows >= rows:
        block_rows = rows
    return block_rows


def _run(kernel, inputs, in_specs, rows, lane_width, block_rows, in_dtype,
         vmem_capacity, cost):
    in_bytes = jnp.dtype(in_dtype).itemsize
    blk_io = block_rows * lane_width * in_bytes
    blk_f32 = block_rows * lane_width * 4
    vmem_limit = 4 * blk_io + 2 * blk_f32 + (2 << 20)
    # Leave >= 16 MiB of physical VMEM for Mosaic scratch / gains / semaphores
    # (v7x has only 64 MiB per TC).
    vmem_limit = max(16 << 20, min(vmem_limit, vmem_capacity - (16 << 20)))

    grid = (pl.cdiv(rows, block_rows),)
    return pl.pallas_call(
        kernel,
        out_shape=jax.ShapeDtypeStruct((rows, lane_width), in_dtype),
        grid_spec=pltpu.PrefetchScalarGridSpec(
            num_scalar_prefetch=0,
            grid=grid,
            in_specs=in_specs,
            # TODO(synk): sweep pipeline_mode=pl.Buffered(3) on the x input on
            # v7x if xprof shows inter-block DMA issue gaps.
            out_specs=pl.BlockSpec((block_rows, lane_width), lambda i: (i, 0)),
        ),
        compiler_params=pltpu.CompilerParams(
            # Row axis parallel so v7x's 2 TensorCores each stream a disjoint
            # row range; a no-op on single-TC v5e/v6e.
            dimension_semantics=("parallel",),
            vmem_limit_bytes=int(vmem_limit),
        ),
        cost_estimate=cost,
    )(*inputs)


def rmsnorm(x, gains, eps: float = 1e-5, block_rows: int | None = None):
    """RMSNorm over the last axis of x, matching the PyTorch reference.

    x:     (..., d_model), any float dtype
    gains: (d_model,)
    """
    in_dtype = x.dtype
    *lead, d_model = x.shape
    assert gains.shape == (d_model,)

    tokens = 1
    for s in lead:
        tokens *= s
    x2d = x.reshape(tokens, d_model)
    # Pre-cast gains to f32 once in the wrapper; the (1, lane_width) block
    # with a constant index map stays VMEM-resident across all grid steps.
    g2d = gains.astype(jnp.float32).reshape(1, d_model)

    in_bytes = jnp.dtype(in_dtype).itemsize
    vmem_capacity = _vmem_capacity_bytes()

    cost = pl.CostEstimate(
        flops=5 * tokens * d_model,
        transcendentals=tokens,
        bytes_accessed=2 * tokens * d_model * in_bytes + d_model * 4,
    )

    # Lane-dense repack: for small power-of-two-friendly d_model fold `fold`
    # logical rows into the lane axis so the last dim is exactly 128 and
    # stores are unmasked.  For d_model that is neither < 128 nor a multiple
    # of 128 (rare), we fall through to the standard path with masked stores.
    # TODO(synk): lane-dense repack for odd d_model (e.g. 96, 200) if needed.
    if d_model < 128 and 128 % d_model == 0 and tokens > 0:
        fold = 128 // d_model
        w = fold * d_model  # == 128
        rows_f = -(-tokens // fold)
        pad = rows_f * fold - tokens
        if pad:
            x2d = jnp.pad(x2d, ((0, pad), (0, 0)))
        x_fold = x2d.reshape(rows_f, w)
        g_fold = jnp.tile(g2d, (1, fold))
        # Block-diagonal all-ones (w, w): P[i, j] = 1 iff i//d == j//d.
        seg = jnp.arange(w, dtype=jnp.int32) // d_model
        p_mat = (seg[:, None] == seg[None, :]).astype(jnp.float32)

        if block_rows is None:
            blk = _choose_block_rows(rows_f, w, in_bytes, vmem_capacity)
        else:
            blk = min(block_rows, rows_f)

        in_specs = [
            pl.BlockSpec((blk, w), lambda i: (i, 0)),
            pl.BlockSpec((1, w), lambda i: (0, 0)),
            pl.BlockSpec((w, w), lambda i: (0, 0)),
        ]
        out_fold = _run(
            functools.partial(_rmsnorm_folded_kernel, eps=eps,
                              inv_d=1.0 / d_model),
            (x_fold, g_fold, p_mat), in_specs, rows_f, w, blk, in_dtype,
            vmem_capacity, cost)
        out2d = out_fold.reshape(rows_f * fold, d_model)[:tokens]
        return out2d.reshape(*lead, d_model)

    if block_rows is None:
        block_rows = _choose_block_rows(tokens, d_model, in_bytes,
                                        vmem_capacity)
    else:
        block_rows = min(block_rows, tokens)

    in_specs = [
        pl.BlockSpec((block_rows, d_model), lambda i: (i, 0)),
        pl.BlockSpec((1, d_model), lambda i: (0, 0)),
    ]
    out2d = _run(
        functools.partial(_rmsnorm_kernel, eps=eps, inv_d=1.0 / d_model),
        (x2d, g2d), in_specs, tokens, d_model, block_rows, in_dtype,
        vmem_capacity, cost)
    return out2d.reshape(*lead, d_model)


def rmsnorm_ref(x, gains, eps: float = 1e-5):
    """Pure-JAX reference mirroring the PyTorch forward."""
    in_dtype = x.dtype
    xf = x.astype(jnp.float32)
    rms = jnp.sqrt(jnp.mean(xf * xf, axis=-1, keepdims=True) + eps)
    return (xf / rms * gains.astype(jnp.float32)).astype(in_dtype)


if __name__ == "__main__":
    key = jax.random.PRNGKey(0)

    # Case 1: small d_model (exercises the lane-dense folded path), f32.
    batch, seq, d_model = 2, 8, 32
    k1, k2 = jax.random.split(key)
    x = jax.random.normal(k1, (batch, seq, d_model), dtype=jnp.float32)
    gains = jnp.ones((d_model,), dtype=jnp.float32) + 0.1 * jnp.arange(
        d_model, dtype=jnp.float32) / d_model
    out = jax.block_until_ready(rmsnorm(x, gains, eps=1e-5))
    ref = rmsnorm_ref(x, gains, eps=1e-5)
    assert out.shape == x.shape and out.dtype == x.dtype
    assert jnp.allclose(out, ref, atol=1e-5, rtol=1e-5)

    # Case 2: production-shaped bf16 / d_model multiple of 128 (standard
    # lane-dense path, multiple grid blocks).
    b2, s2, d2 = 2, 128, 1024
    xb = jax.random.normal(k2, (b2, s2, d2), dtype=jnp.float32).astype(
        jnp.bfloat16)
    gb = (jnp.ones((d2,), dtype=jnp.float32)
          + 0.05 * jnp.sin(jnp.arange(d2, dtype=jnp.float32)))
    outb = jax.block_until_ready(rmsnorm(xb, gb, eps=1e-5))
    refb = rmsnorm_ref(xb, gb, eps=1e-5)
    assert outb.shape == xb.shape and outb.dtype == xb.dtype
    assert jnp.allclose(outb.astype(jnp.float32), refb.astype(jnp.float32),
                        atol=2e-2, rtol=2e-2)

    print("KERNEL_OK")
</pallas_src>

<mosaic_0001>
module attributes {stable_mosaic.version = 11 : i64} {
  func.func @_rmsnorm_folded_kernel(%arg0: i32, %arg1: memref<4x128xf32, #tpu.memory_space<vmem>>, %arg2: memref<1x128xf32, #tpu.memory_space<vmem>>, %arg3: memref<128x128xf32, #tpu.memory_space<vmem>>, %arg4: memref<4x128xf32, #tpu.memory_space<vmem>>) attributes {dimension_semantics = [#tpu.dimension_semantics<parallel>], iteration_bounds = array<i64: 1>, scalar_prefetch = 0 : i64, scratch_operands = 0 : i64, tpu.core_type = #tpu.core_type<tc>, window_params = [{transform_indices = @transform_0, window_bounds = array<i64: 4, 128>}, {pipeline_mode = #tpu.pipeline_mode<synchronous>, transform_indices = @transform_1, window_bounds = array<i64: 1, 128>}, {pipeline_mode = #tpu.pipeline_mode<synchronous>, transform_indices = @transform_2, window_bounds = array<i64: 128, 128>}, {transform_indices = @transform_3, window_bounds = array<i64: 4, 128>}]} {
    %c0 = arith.constant 0 : index
    %c0_0 = arith.constant 0 : index
    %0 = vector.load %arg1[%c0, %c0_0] : memref<4x128xf32, #tpu.memory_space<vmem>>, vector<4x128xf32>
    %1 = arith.mulf %0, %0 : vector<4x128xf32>
    %c0_1 = arith.constant 0 : index
    %c0_2 = arith.constant 0 : index
    %2 = vector.load %arg3[%c0_1, %c0_2] : memref<128x128xf32, #tpu.memory_space<vmem>>, vector<128x128xf32>
    %cst = arith.constant dense<0.000000e+00> : vector<4x128xf32>
    %3 = tpu.matmul %1, %2, %cst {dimension_numbers = #tpu.dot_dimension_numbers<[1], [0], [0], [1], [0, 0, 1, 1], [], []>} : vector<4x128xf32>, vector<128x128xf32>, vector<4x128xf32> -> vector<4x128xf32>
    %cst_3 = arith.constant 3.125000e-02 : f32
    %4 = vector.broadcast %cst_3 : f32 to vector<4x128xf32>
    %5 = arith.mulf %3, %4 : vector<4x128xf32>
    %cst_4 = arith.constant 9.99999974E-6 : f32
    %6 = vector.broadcast %cst_4 : f32 to vector<4x128xf32>
    %7 = arith.addf %5, %6 : vector<4x128xf32>
    %8 = math.rsqrt %7 : vector<4x128xf32>
    %9 = arith.mulf %0, %8 : vector<4x128xf32>
    %c0_5 = arith.constant 0 : index
    %c0_6 = arith.constant 0 : index
    %10 = vector.load %arg2[%c0_5, %c0_6] : memref<1x128xf32, #tpu.memory_space<vmem>>, vector<1x128xf32>
    %11 = vector.broadcast %10 : vector<1x128xf32> to vector<4x128xf32>
    %12 = arith.mulf %9, %11 : vector<4x128xf32>
    %c0_7 = arith.constant 0 : index
    %c0_8 = arith.constant 0 : index
    %13 = vector.load %arg4[%c0_7, %c0_8] : memref<4x128xf32, #tpu.memory_space<vmem>>, vector<4x128xf32>
    tpu.vector_store %arg4[%c0_7, %c0_8], %12 {strides = array<i32>} : memref<4x128xf32, #tpu.memory_space<vmem>>, vector<4x128xf32>,
    return
  }
  func.func @transform_0(%arg0: i32) -> (i32, i32) {
    %c0_i32 = arith.constant 0 : i32
    %c0_i32_0 = arith.constant 0 : i32
    return %arg0, %c0_i32 : i32, i32
  }
  func.func @transform_1(%arg0: i32) -> (i32, i32) {
    %c0_i32 = arith.constant 0 : i32
    %c0_i32_0 = arith.constant 0 : i32
    %c0_i32_1 = arith.constant 0 : i32
    return %c0_i32, %c0_i32_0 : i32, i32
  }
  func.func @transform_2(%arg0: i32) -> (i32, i32) {
    %c0_i32 = arith.constant 0 : i32
    %c0_i32_0 = arith.constant 0 : i32
    %c0_i32_1 = arith.constant 0 : i32
    return %c0_i32, %c0_i32_0 : i32, i32
  }
  func.func @transform_3(%arg0: i32) -> (i32, i32) {
    %c0_i32 = arith.constant 0 : i32
    %c0_i32_0 = arith.constant 0 : i32
    return %arg0, %c0_i32 : i32, i32
  }
}

</mosaic_0001>

<llo_original>
// kernel: tpu_custom_call.1
$region0: #{tpu_custom_call.1}
  #allocation0 [shape = 'u32[]', space=smem, size = 0x4, offset = 0x4, fixed_abs, tag = 'smem constant byte address 0x4 - core index']
  #allocation1 [shape = 'u32[144,128]{1,0:T(1,128)}', space=vmem, size = 0x12000, scoped, tag = 'internal scratch']
  %s0 = inlined_call_operand.hbm [shape: f32[4,128], index: 0, kind: input, shape index: {}]
  %s1 = inlined_call_operand.vmem [shape: f32[1,128], index: 1, kind: input, shape index: {}]
  %s2 = inlined_call_operand.hbm [shape: f32[128,128], index: 2, kind: input, shape index: {}]
  %s3 = inlined_call_operand.hbm [shape: f32[4,128], index: 3, kind: output, shape index: {}]
  %s4 = sld [smem:[#allocation0]]
  $region30: #{tpu_custom_call.1} parent=0
    _
  %s6 = ssub.s32 1, %s4
  %s7 = scalar_select 0, %s6, %s4
  $region1: #{tpu_custom_call.1} parent=0
    #allocation2 [shape = 'u8[2048]{0}', space=vmem, size = 0x800, scoped, tag = 'input window, operand 0, single buffered']
    #allocation3 [shape = 's32[1]{0}', space=sflag, size = 0x4, scoped, tag = 'scoped memory for tpu_custom_call.1']
    #allocation4 [shape = 's32[1]{0}', space=sflag, size = 0x4, scoped, tag = 'scoped memory for tpu_custom_call.1']
    #allocation5 [shape = 'u8[65536]{0}', space=vmem, size = 0x10000, scoped, tag = 'input window, operand 2, single buffered']
    #allocation6 [shape = 's32[1]{0}', space=sflag, size = 0x4, scoped, tag = 'scoped memory for tpu_custom_call.1']
    #allocation7 [shape = 'u8[2048]{0}', space=vmem, size = 0x800, scoped, tag = 'output window, operand 0, single buffered']
    %8 = vsyncpa [#allocation3], 0
    %9 = vsyncpa [#allocation6], 0
    %10 = vsyncpa [#allocation4], 0
    // Predicated region
    $region2: #{tpu_custom_call.1} parent=1 // pred_check
      _
    $region3: #{tpu_custom_call.1} parent=1 // pred_check_branch
      %12 = sbr.rel (0) target = $region5
    $region4: #{tpu_custom_call.1} parent=1 // pred_region
      %s14 = ssub.s32 64, 64
      %15 = vsyncadd [#allocation3], %s14
      %s17 = sshll.u32 [#allocation2], 4
      %s18 = int_to_ptr.vmem [resolvable:$true] %s17
      %20 = dma.hbm_to_vmem [thread:$0]  %s0, 64, %s18, [#allocation3]
    $region5: #{tpu_custom_call.1} parent=1 // pred_fallthru
      _
    // Predicated region
    $region6: #{tpu_custom_call.1} parent=1 // pred_check
      _
    $region7: #{tpu_custom_call.1} parent=1 // pred_check_branch
      %22 = sbr.rel (0) target = $region9
    $region8: #{tpu_custom_call.1} parent=1 // pred_region
      _
    $region9: #{tpu_custom_call.1} parent=1 // pred_fallthru
      _
    // Predicated region
    $region10: #{tpu_custom_call.1} parent=1 // pred_check
      _
    $region11: #{tpu_custom_call.1} parent=1 // pred_check_branch
      %24 = sbr.rel (0) target = $region13
    $region12: #{tpu_custom_call.1} parent=1 // pred_region
      %s26 = ssub.s32 2048, 2048
      %27 = vsyncadd [#allocation6], %s26
      %s28 = sshll.u32 [#allocation5], 4
      %s29 = int_to_ptr.vmem [resolvable:$true] %s28
      %34 = dma.hbm_to_vmem [thread:$0]  %s2, 2048, %s29, [#allocation6], 128, 128, 8
    $region13: #{tpu_custom_call.1} parent=1 // pred_fallthru
      _
    // Predicated region
    $region14: #{tpu_custom_call.1} parent=1 // pred_check
      _
    $region15: #{tpu_custom_call.1} parent=1 // pred_check_branch
      %36 = sbr.rel (0) target = $region17
    $region16: #{tpu_custom_call.1} parent=1 // pred_region
      %37 = dma.done [#allocation3], 64
    $region17: #{tpu_custom_call.1} parent=1 // pred_fallthru
      _
    // Predicated region
    $region18: #{tpu_custom_call.1} parent=1 // pred_check
      _
    $region19: #{tpu_custom_call.1} parent=1 // pred_check_branch
      %39 = sbr.rel (0) target = $region21
    $region20: #{tpu_custom_call.1} parent=1 // pred_region
      %40 = dma.done [#allocation6], 2048
    $region21: #{tpu_custom_call.1} parent=1 // pred_fallthru
      _
    %v41 = vld [vmem:[#allocation2] sm:$0xf]
    %v42 = vmul.f32 %v41, %v41
    %v43 = vld [vmem:[#allocation5] sm:$0xff]
    %v44 = vld [vmem:[#allocation5 + $0x8] sm:$0xff]
    %v45 = vld [vmem:[#allocation5 + $0x10] sm:$0xff]
    %v46 = vld [vmem:[#allocation5 + $0x18] sm:$0xff]
    %v47 = vld [vmem:[#allocation5 + $0x20] sm:$0xff]
    %v48 = vld [vmem:[#allocation5 + $0x28] sm:$0xff]
    %v49 = vld [vmem:[#allocation5 + $0x30] sm:$0xff]
    %v50 = vld [vmem:[#allocation5 + $0x38] sm:$0xff]
    %v51 = vld [vmem:[#allocation5 + $0x40] sm:$0xff]
    %v52 = vld [vmem:[#allocation5 + $0x48] sm:$0xff]
    %v53 = vld [vmem:[#allocation5 + $0x50] sm:$0xff]
    %v54 = vld [vmem:[#allocation5 + $0x58] sm:$0xff]
    %v55 = vld [vmem:[#allocation5 + $0x60] sm:$0xff]
    %v56 = vld [vmem:[#allocation5 + $0x68] sm:$0xff]
    %v57 = vld [vmem:[#allocation5 + $0x70] sm:$0xff]
    %v58 = vld [vmem:[#allocation5 + $0x78] sm:$0xff]
    %59 = vmatprep.subr.mxu0 0.0
    %60 = vmatpush1.msra.mxu0 %v43
    %61 = vmatprep.subr.mxu0 0.0
    %62 = vmatpush1.msra.mxu0 %v44
    %63 = vmatprep.subr.mxu0 0.0
    %64 = vmatpush1.msra.mxu0 %v45
    %65 = vmatprep.subr.mxu0 0.0
    %66 = vmatpush1.msra.mxu0 %v46
    %67 = vmatprep.subr.mxu0 0.0
    %68 = vmatpush1.msra.mxu0 %v47
    %69 = vmatprep.subr.mxu0 0.0
    %70 = vmatpush1.msra.mxu0 %v48
    %71 = vmatprep.subr.mxu0 0.0
    %72 = vmatpush1.msra.mxu0 %v49
    %73 = vmatprep.subr.mxu0 0.0
    %74 = vmatpush1.msra.mxu0 %v50
    %75 = vmatprep.subr.mxu0 0.0
    %76 = vmatpush1.msra.mxu0 %v51
    %77 = vmatprep.subr.mxu0 0.0
    %78 = vmatpush1.msra.mxu0 %v52
    %79 = vmatprep.subr.mxu0 0.0
    %80 = vmatpush1.msra.mxu0 %v53
    %81 = vmatprep.subr.mxu0 0.0
    %82 = vmatpush1.msra.mxu0 %v54
    %83 = vmatprep.subr.mxu0 0.0
    %84 = vmatpush1.msra.mxu0 %v55
    %85 = vmatprep.subr.mxu0 0.0
    %86 = vmatpush1.msra.mxu0 %v56
    %87 = vmatprep.subr.mxu0 0.0
    %88 = vmatpush1.msra.mxu0 %v57
    %89 = vmatprep.subr.mxu0 0.0
    %90 = vmatpush1.msra.mxu0 %v58
    %91 = vmatprep.subr.mxu0 0.0
    %92 = vmatpush1.msra.mxu0 0.0
    %93 = vmatprep.subr.mxu0 0.0
    %94 = vmatpush1.msra.mxu0 0.0
    %95 = vmatprep.subr.mxu0 0.0
    %96 = vmatpush1.msra.mxu0 0.0
    %97 = vmatprep.subr.mxu0 0.0
    %98 = vmatpush1.msra.mxu0 0.0
    %99 = vmatprep.subr.mxu0 0.0
    %100 = vmatpush1.msra.mxu0 0.0
    %101 = vmatprep.subr.mxu0 0.0
    %102 = vmatpush1.msra.mxu0 0.0
    %103 = vmatprep.subr.mxu0 0.0
    %104 = vmatpush1.msra.mxu0 0.0
    %105 = vmatprep.subr.mxu0 0.0
    %106 = vmatpush1.msra.mxu0 0.0
    %107 = vmatprep.subr.mxu0 0.0
    %108 = vmatpush1.msra.mxu0 0.0
    %109 = vmatprep.subr.mxu0 0.0
    %110 = vmatpush1.msra.mxu0 0.0
    %111 = vmatprep.subr.mxu0 0.0
    %112 = vmatpush1.msra.mxu0 0.0
    %113 = vmatprep.subr.mxu0 0.0
    %114 = vmatpush1.msra.mxu0 0.0
    %115 = vmatprep.subr.mxu0 0.0
    %116 = vmatpush1.msra.mxu0 0.0
    %117 = vmatprep.subr.mxu0 0.0
    %118 = vmatpush1.msra.mxu0 0.0
    %119 = vmatprep.subr.mxu0 0.0
    %120 = vmatpush1.msra.mxu0 0.0
    %121 = vmatprep.subr.mxu0 0.0
    %122 = vmatpush1.msra.mxu0 0.0
    %123 = vmatprep.mubr.f32.mxu0 0.0
    %124 = vmatmul.mubr.f32.gmra.mrb[0].mxu0 %v42
    %v125 = vpop.f32.mrb[0].mxu0
    %v126 = vadd.f32 0.0, %v125
    %v127 = vpop.f32.mrb[0].mxu0
    %128 = vdwg.mxu0
    %v129 = vmul.f32 %v126, 0.03125
    %v130 = vadd.f32 %v129, 1e-05
    %v131 = vrsqrt.pop %v130
    %v132 = vmul.f32 %v41, %v131
    %v133 = vld [vmem:[%s1] sm:$0x1]
    %v135 = vlaneseq
    %v136 = vshrl.u32 %v135, 7
    %v137 = vsub.s32 0, %v136
    %v138 = vrot.slane %v133, %v137
    %v140 = vmul.f32 %v132, %v138
    %141 = vst [vmem:[#allocation7] sm:$0xf] %v140
    // Predicated region
    $region22: #{tpu_custom_call.1} parent=1 // pred_check
      _
    $region23: #{tpu_custom_call.1} parent=1 // pred_check_branch
      %143 = sbr.rel (0) target = $region25
    $region24: #{tpu_custom_call.1} parent=1 // pred_region
      %s145 = ssub.s32 64, 64
      %146 = vsyncadd [#allocation4], %s145
      %s148 = sshll.u32 [#allocation7], 4
      %s149 = int_to_ptr.vmem [resolvable:$true] %s148
      %151 = dma.vmem_to_hbm [thread:$0]  %s149, 64, %s3, [#allocation4]
    $region25: #{tpu_custom_call.1} parent=1 // pred_fallthru
      _
    // Predicated region
    $region26: #{tpu_custom_call.1} parent=1 // pred_check
      _
    $region27: #{tpu_custom_call.1} parent=1 // pred_check_branch
      %153 = sbr.rel (0) target = $region29
    $region28: #{tpu_custom_call.1} parent=1 // pred_region
      %154 = dma.done [#allocation4], 64
    $region29: #{tpu_custom_call.1} parent=1 // pred_fallthru
      _
    %155 = vsyncpa [#allocation3], 1
    %156 = vsyncpa [#allocation6], 1
    %157 = vsyncpa [#allocation4], 1

</llo_original>
